<compile_context>
chip_gen: v5e
topology: v5e:2x2
jax: 0.10.0
libtpu: 0.0.40
codegen_flags: <defaults>
</compile_context>

<pallas_src>
import functools

import jax
import jax.numpy as jnp
from jax.experimental import pallas as pl
from jax.experimental.pallas import tpu as pltpu


def _round_up(x, m):
    return ((x + m - 1) // m) * m


def _fused_head_kernel(x_ref, w_ref, b_ref, d_ref, c_ref, *, fd, fd_pad):
    """One (batch, N-tile): a single fused 1x1-conv matmul, split into two outputs."""
    x = x_ref[0]                                           # (C, TN)
    y = jnp.dot(w_ref[...], x, preferred_element_type=jnp.float32) + b_ref[...]
    d_ref[0] = y[:fd].astype(d_ref.dtype)                  # deltas rows
    c_ref[0] = y[fd_pad:].astype(c_ref.dtype)              # cls rows (8-aligned start)


def _deltas_only_kernel(x_ref, w_ref, b_ref, d_ref):
    x = x_ref[0]                                           # (C, TN)
    d = jnp.dot(w_ref[...], x, preferred_element_type=jnp.float32) + b_ref[...]
    d_ref[0] = d.astype(d_ref.dtype)


def init_detection_head_params(key, in_channels, num_anchors, dim, num_classes):
    """Deterministic synthetic init of the 1x1 Conv1D weights/biases."""
    kd_w, kd_b, kc_w, kc_b = jax.random.split(key, 4)
    f_deltas = num_anchors * dim * 2
    wd = jax.random.normal(kd_w, (f_deltas, in_channels), jnp.float32) * 0.1
    bd = jax.random.normal(kd_b, (f_deltas, 1), jnp.float32) * 0.1
    params = {"deltas_w": wd, "deltas_b": bd}
    if num_classes > 0:
        f_cls = num_anchors * num_classes
        wc = jax.random.normal(kc_w, (f_cls, in_channels), jnp.float32) * 0.1
        bc = jax.random.normal(kc_b, (f_cls, 1), jnp.float32) * 0.1
        params["cls_w"] = wc
        params["cls_b"] = bc
    return params


def _normalize_inputs(features, anchors):
    """Mirror of DetectionHead._normalize_inputs."""
    if features.ndim == 4:
        assert anchors.ndim == 5, (
            "The shape of the anchors must be BCAHW matching the BCHW pattern "
            "of the features.")
        B, C, H, W = features.shape
        features = features.reshape(B, C, H * W)
        a = anchors.shape
        anchors = anchors.reshape(a[0], a[1], a[2], -1)
    elif features.ndim == 3:
        assert anchors.ndim == 3, (
            "The shape of the anchors must match the BCN pattern of the features.")
        a = anchors.shape
        anchors = anchors.reshape(a[0], a[1], 1, -1)
    else:
        raise RuntimeError(
            "Box tensor has an incompatible shape: {}".format(features.shape))
    assert features.ndim == 3
    return features, anchors


def detection_head_forward(features, anchors, params, num_classes,
                           *, target_tn=1024, use_bf16=False):
    """Returns (deltas, class_ids) exactly like DetectionHead.forward."""
    features, anchors = _normalize_inputs(features, anchors)
    B, C, N = features.shape
    dim = anchors.shape[1] // 2
    out_dtype = features.dtype

    wd, bd = params["deltas_w"], params["deltas_b"]
    Fd = wd.shape[0]

    # Lane-axis tiling: TN is a multiple of 128 (capped so small inputs are not
    # over-padded); N is zero-padded up to a multiple of TN, pad columns are
    # cropped again after the kernel.
    TN = min(target_tn, _round_up(N, 128))
    Npad = _round_up(N, TN)
    n_tiles = Npad // TN
    x = features
    if Npad != N:
        x = jnp.pad(x, ((0, 0), (0, 0), (0, Npad - N)))

    compute_dtype = jnp.bfloat16 if use_bf16 else x.dtype
    x = x.astype(compute_dtype)
    itemsize_in = jnp.dtype(compute_dtype).itemsize
    itemsize_out = jnp.dtype(out_dtype).itemsize

    if num_classes > 0:
        wc, bc = params["cls_w"], params["cls_b"]
        Fc = wc.shape[0]
        # Fuse the two heads into one weight matrix; pad the deltas rows up to
        # a sublane multiple of 8 so the in-kernel split is tile-aligned.
        Fd_pad = _round_up(Fd, 8)
        F_all = Fd_pad + Fc
        w_all = jnp.zeros((F_all, C), compute_dtype)
        w_all = w_all.at[:Fd].set(wd.astype(compute_dtype))
        w_all = w_all.at[Fd_pad:].set(wc.astype(compute_dtype))
        b_all = jnp.zeros((F_all, 1), jnp.float32)
        b_all = b_all.at[:Fd].set(bd.astype(jnp.float32))
        b_all = b_all.at[Fd_pad:].set(bc.astype(jnp.float32))

        cost = pl.CostEstimate(
            flops=2 * B * F_all * C * Npad,
            transcendentals=0,
            bytes_accessed=(B * C * Npad * itemsize_in
                            + F_all * (C * itemsize_in + 4)
                            + B * (Fd + Fc) * Npad * itemsize_out))

        kernel = functools.partial(_fused_head_kernel, fd=Fd, fd_pad=Fd_pad)
        deltas_conv, cls_conv = pl.pallas_call(
            kernel,
            out_shape=(
                jax.ShapeDtypeStruct((B, Fd, Npad), out_dtype),
                jax.ShapeDtypeStruct((B, Fc, Npad), out_dtype),
            ),
            grid_spec=pltpu.PrefetchScalarGridSpec(
                num_scalar_prefetch=0,
                grid=(B, n_tiles),
                in_specs=[
                    pl.BlockSpec((1, C, TN), lambda b, n: (b, 0, n)),
                    pl.BlockSpec((F_all, C), lambda b, n: (0, 0)),
                    pl.BlockSpec((F_all, 1), lambda b, n: (0, 0)),
                ],
                out_specs=[
                    pl.BlockSpec((1, Fd, TN), lambda b, n: (b, 0, n)),
                    pl.BlockSpec((1, Fc, TN), lambda b, n: (b, 0, n)),
                ],
            ),
            compiler_params=pltpu.CompilerParams(
                dimension_semantics=("parallel", "parallel")),
            cost_estimate=cost,
        )(x, w_all, b_all)
        class_ids = cls_conv[:, :, :N].reshape(B, num_classes, -1)
    else:
        cost = pl.CostEstimate(
            flops=2 * B * Fd * C * Npad,
            transcendentals=0,
            bytes_accessed=(B * C * Npad * itemsize_in
                            + Fd * (C * itemsize_in + 4)
                            + B * Fd * Npad * itemsize_out))
        deltas_conv = pl.pallas_call(
            _deltas_only_kernel,
            out_shape=jax.ShapeDtypeStruct((B, Fd, Npad), out_dtype),
            grid_spec=pltpu.PrefetchScalarGridSpec(
                num_scalar_prefetch=0,
                grid=(B, n_tiles),
                in_specs=[
                    pl.BlockSpec((1, C, TN), lambda b, n: (b, 0, n)),
                    pl.BlockSpec((Fd, C), lambda b, n: (0, 0)),
                    pl.BlockSpec((Fd, 1), lambda b, n: (0, 0)),
                ],
                out_specs=pl.BlockSpec((1, Fd, TN), lambda b, n: (b, 0, n)),
            ),
            compiler_params=pltpu.CompilerParams(
                dimension_semantics=("parallel", "parallel")),
            cost_estimate=cost,
        )(x, wd.astype(compute_dtype), bd.astype(jnp.float32))
        class_ids = None

    deltas = deltas_conv[:, :, :N].reshape(B, dim * 2, -1)
    return deltas, class_ids


def _reference_forward(features, anchors, params, num_classes):
    """Pure-JAX reference of the same forward pass (for correctness check)."""
    features, anchors = _normalize_inputs(features, anchors)
    B = features.shape[0]
    dim = anchors.shape[1] // 2
    d = jnp.einsum("fc,bcn->bfn", params["deltas_w"], features) + params["deltas_b"][None]
    d = d.reshape(B, dim * 2, -1)
    c = None
    if num_classes > 0:
        c = jnp.einsum("fc,bcn->bfn", params["cls_w"], features) + params["cls_b"][None]
        c = c.reshape(B, num_classes, -1)
    return d, c


if __name__ == "__main__":
    # Small shapes consistent with the module's "group (a)" path:
    #   features: BCHW, anchors: BCAHW with C_anchors = 2*dim.
    B, C, H, W = 2, 4, 16, 16
    dim = 2                      # 2D boxes -> anchor channel dim = 2*dim = 4
    num_anchors = 3
    num_classes = 5

    key = jax.random.PRNGKey(0)
    k_feat, k_anch, k_params, k_feat2 = jax.random.split(key, 4)
    features = jax.random.normal(k_feat, (B, C, H, W), jnp.float32)
    anchors = jax.random.normal(k_anch, (B, 2 * dim, num_anchors, H, W), jnp.float32)

    params = init_detection_head_params(k_params, C, num_anchors, dim, num_classes)

    deltas, class_ids = detection_head_forward(features, anchors, params, num_classes)
    deltas = jax.block_until_ready(deltas)
    class_ids = jax.block_until_ready(class_ids)

    # Shape checks: (B, 2*dim, A*H*W) and (B, num_classes, A*H*W)
    assert deltas.shape == (B, 2 * dim, num_anchors * H * W), deltas.shape
    assert class_ids.shape == (B, num_classes, num_anchors * H * W), class_ids.shape

    # Numerical check against pure-JAX reference.
    ref_d, ref_c = _reference_forward(features, anchors, params, num_classes)
    assert jnp.allclose(deltas, ref_d, atol=1e-5, rtol=1e-5)
    assert jnp.allclose(class_ids, ref_c, atol=1e-5, rtol=1e-5)

    # N not a multiple of 128 exercises the lane-axis pad + crop path.
    H2, W2 = 16, 15
    features2 = jax.random.normal(k_feat2, (B, C, H2, W2), jnp.float32)
    anchors2 = jnp.zeros((B, 2 * dim, num_anchors, H2, W2), jnp.float32)
    d2, c2 = detection_head_forward(features2, anchors2, params, num_classes)
    rd2, rc2 = _reference_forward(features2, anchors2, params, num_classes)
    assert jnp.allclose(jax.block_until_ready(d2), rd2, atol=1e-5, rtol=1e-5)
    assert jnp.allclose(c2, rc2, atol=1e-5, rtol=1e-5)

    # num_classes <= 0 path: deltas only, class_ids is None.
    params_d = {"deltas_w": params["deltas_w"], "deltas_b": params["deltas_b"]}
    d3, c3 = detection_head_forward(features, anchors, params_d, 0)
    rd3, _ = _reference_forward(features, anchors, params_d, 0)
    assert c3 is None
    assert jnp.allclose(jax.block_until_ready(d3), rd3, atol=1e-5, rtol=1e-5)

    print("KERNEL_OK")
</pallas_src>

<mosaic_0001>
module attributes {stable_mosaic.version = 11 : i64} {
  func.func @_fused_head_kernel(%arg0: i32, %arg1: i32, %arg2: memref<1x4x256xf32, #tpu.memory_space<vmem>>, %arg3: memref<31x4xf32, #tpu.memory_space<vmem>>, %arg4: memref<31x1xf32, #tpu.memory_space<vmem>>, %arg5: memref<1x12x256xf32, #tpu.memory_space<vmem>>, %arg6: memref<1x15x256xf32, #tpu.memory_space<vmem>>) attributes {dimension_semantics = [#tpu.dimension_semantics<parallel>, #tpu.dimension_semantics<parallel>], iteration_bounds = array<i64: 2, 1>, scalar_prefetch = 0 : i64, scratch_operands = 0 : i64, tpu.core_type = #tpu.core_type<tc>, window_params = [{transform_indices = @transform_0, window_bounds = array<i64: 1, 4, 256>}, {pipeline_mode = #tpu.pipeline_mode<synchronous>, transform_indices = @transform_1, window_bounds = array<i64: 31, 4>}, {pipeline_mode = #tpu.pipeline_mode<synchronous>, transform_indices = @transform_2, window_bounds = array<i64: 31, 1>}, {transform_indices = @transform_3, window_bounds = array<i64: 1, 12, 256>}, {transform_indices = @transform_4, window_bounds = array<i64: 1, 15, 256>}]} {
    %c0 = arith.constant 0 : index
    %c0_0 = arith.constant 0 : index
    %c0_1 = arith.constant 0 : index
    %0 = vector.load %arg2[%c0, %c0_0, %c0_1] : memref<1x4x256xf32, #tpu.memory_space<vmem>>, vector<1x4x256xf32>
    %1 = vector.shape_cast %0 : vector<1x4x256xf32> to vector<4x256xf32>
    %c0_2 = arith.constant 0 : index
    %c0_3 = arith.constant 0 : index
    %2 = vector.load %arg3[%c0_2, %c0_3] : memref<31x4xf32, #tpu.memory_space<vmem>>, vector<31x4xf32>
    %cst = arith.constant dense<0.000000e+00> : vector<31x256xf32>
    %3 = tpu.matmul %2, %1, %cst {dimension_numbers = #tpu.dot_dimension_numbers<[1], [0], [0], [1], [0, 0, 1, 1], [], []>} : vector<31x4xf32>, vector<4x256xf32>, vector<31x256xf32> -> vector<31x256xf32>
    %c0_4 = arith.constant 0 : index
    %c0_5 = arith.constant 0 : index
    %4 = vector.load %arg4[%c0_4, %c0_5] : memref<31x1xf32, #tpu.memory_space<vmem>>, vector<31x1xf32>
    %5 = vector.broadcast %4 : vector<31x1xf32> to vector<31x256xf32>
    %6 = arith.addf %3, %5 : vector<31x256xf32>
    %7 = vector.extract_strided_slice %6 {offsets = [0, 0], sizes = [12, 256], strides = [1, 1]} : vector<31x256xf32> to vector<12x256xf32>
    %c0_6 = arith.constant 0 : index
    %c0_7 = arith.constant 0 : index
    %c0_8 = arith.constant 0 : index
    %8 = vector.load %arg5[%c0_6, %c0_7, %c0_8] : memref<1x12x256xf32, #tpu.memory_space<vmem>>, vector<1x12x256xf32>
    %9 = vector.shape_cast %8 : vector<1x12x256xf32> to vector<12x256xf32>
    %10 = vector.shape_cast %7 : vector<12x256xf32> to vector<1x12x256xf32>
    tpu.vector_store %arg5[%c0_6, %c0_7, %c0_8], %10 {strides = array<i32>} : memref<1x12x256xf32, #tpu.memory_space<vmem>>, vector<1x12x256xf32>,
    %11 = vector.extract_strided_slice %6 {offsets = [16, 0], sizes = [15, 256], strides = [1, 1]} : vector<31x256xf32> to vector<15x256xf32>
    %c0_9 = arith.constant 0 : index
    %c0_10 = arith.constant 0 : index
    %c0_11 = arith.constant 0 : index
    %12 = vector.load %arg6[%c0_9, %c0_10, %c0_11] : memref<1x15x256xf32, #tpu.memory_space<vmem>>, vector<1x15x256xf32>
    %13 = vector.shape_cast %12 : vector<1x15x256xf32> to vector<15x256xf32>
    %14 = vector.shape_cast %11 : vector<15x256xf32> to vector<1x15x256xf32>
    tpu.vector_store %arg6[%c0_9, %c0_10, %c0_11], %14 {strides = array<i32>} : memref<1x15x256xf32, #tpu.memory_space<vmem>>, vector<1x15x256xf32>,
    return
  }
  func.func @transform_0(%arg0: i32, %arg1: i32) -> (i32, i32, i32) {
    %c0_i32 = arith.constant 0 : i32
    %c0_i32_0 = arith.constant 0 : i32
    return %arg0, %c0_i32, %arg1 : i32, i32, i32
  }
  func.func @transform_1(%arg0: i32, %arg1: i32) -> (i32, i32) {
    %c0_i32 = arith.constant 0 : i32
    %c0_i32_0 = arith.constant 0 : i32
    %c0_i32_1 = arith.constant 0 : i32
    return %c0_i32, %c0_i32_0 : i32, i32
  }
  func.func @transform_2(%arg0: i32, %arg1: i32) -> (i32, i32) {
    %c0_i32 = arith.constant 0 : i32
    %c0_i32_0 = arith.constant 0 : i32
    %c0_i32_1 = arith.constant 0 : i32
    return %c0_i32, %c0_i32_0 : i32, i32
  }
  func.func @transform_3(%arg0: i32, %arg1: i32) -> (i32, i32, i32) {
    %c0_i32 = arith.constant 0 : i32
    %c0_i32_0 = arith.constant 0 : i32
    return %arg0, %c0_i32, %arg1 : i32, i32, i32
  }
  func.func @transform_4(%arg0: i32, %arg1: i32) -> (i32, i32, i32) {
    %c0_i32 = arith.constant 0 : i32
    %c0_i32_0 = arith.constant 0 : i32
    return %arg0, %c0_i32, %arg1 : i32, i32, i32
  }
}

</mosaic_0001>

<llo_original>
// kernel: tpu_custom_call.1
$region0: #{tpu_custom_call.1}
  #allocation0 [shape = 'u32[]', space=smem, size = 0x4, offset = 0x4, fixed_abs, tag = 'smem constant byte address 0x4 - core index']
  #allocation1 [shape = 'u32[72,128]{1,0:T(1,128)}', space=vmem, size = 0x9000, scoped, tag = 'internal scratch']
  %s0 = inlined_call_operand.vmem [shape: f32[2,4,256], index: 0, kind: input, shape index: {}]
  %s1 = inlined_call_operand.vmem [shape: f32[31,4], index: 1, kind: input, shape index: {}]
  %s2 = inlined_call_operand.vmem [shape: f32[31,1], index: 2, kind: input, shape index: {}]
  %s3 = inlined_call_operand.vmem [shape: f32[2,12,256], index: 3, kind: output, shape index: {0}]
  %s4 = inlined_call_operand.vmem [shape: f32[2,15,256], index: 4, kind: output, shape index: {1}]
  %5 = xla_tuple %s3, %s4
  %s6 = sld [smem:[#allocation0]]
  $region53: #{tpu_custom_call.1} parent=0
    _
  %s8 = ssub.s32 1, %s6
  %s9 = scalar_select 0, %s8, %s6
  loop: start=0, step=1, limit=4
  $region2: #{tpu_custom_call.1} parent=0 // loop_pre_header
    _
  $region3: #{tpu_custom_call.1} parent=0 // loop_header
    %s11 = sphi 0, %s15
    %p12 = scmp.ge.s32.totalorder %s11, 4
    %s18 = sphi 0, %s30
    %s19 = sphi 0, %s26
    %s20 = sphi 0, %s18
    %s21 = sphi 0, %s19
    %s22 = sphi 0, %s20
    %s23 = sphi 0, %s21
    %s35 = sphi 0, %s37
    %s38 = sphi 0, %s35
    %s39 = sphi 0, %s38
    %s55 = sphi 0, %s39
    %s59 = sphi 0, %s59
    %s61 = sphi 0, %s59
    %s62 = sphi 0, %s61
    %s76 = sphi 0, %s62
    %s80 = sphi 0, %s80
    %s82 = sphi 0, %s80
    %s83 = sphi 0, %s82
    %s97 = sphi 0, %s83
    %s105 = sphi 0, %s107
    %s108 = sphi 0, %s105
    %s109 = sphi 0, %s108
    %s125 = sphi 0, %s109
    %s133 = sphi 0, %s135
    %s136 = sphi 0, %s133
    %s137 = sphi 0, %s136
    %s153 = sphi 0, %s137
  $region4: #{tpu_custom_call.1} parent=0 // loop_header_branch
    %14 = sbr.rel (%p12) target = $region8
  $region5: #{tpu_custom_call.1} parent=0 // loop_body
    %s16 = ssub.s32 %s11, 1
    %s17 = ssub.s32 %s11, 2
    %s24 = sadd.s32 1, %s19
    %p25 = scmp.ge.s32.totalorder %s24, 1
    %s26 = scalar_select %p25, 0, %s24
    %s27 = sadd.s32 1, %s18
    %s28 = scalar_select %p25, %s27, %s18
    %p29 = scmp.ge.s32.totalorder %s28, 2
    %s30 = scalar_select %p29, 0, %s28
    %s31 = ssub.s32 %s18, %s30
    %s32 = ssub.s32 %s19, %s26
    %s33 = sor.u32 %s31, %s32
    %p34 = scmp.eq.s32.totalorder %s33, 0
    %s36 = sadd.s32 %s35, 1
    %s37 = scalar_select %p34, %s35, %s36
    %p40 = pneg %p34
    %p41 = scmp.eq.s32.totalorder %s11, 1
    %p42 = por %p40, %p41
    %p43 = scmp.ne.s32.totalorder %s35, %s38
    %p44 = scmp.eq.s32.totalorder %s11, 0
    %p45 = por %p43, %p44
    %p46 = scmp.ne.s32.totalorder %s35, %s38
    %p47 = scmp.eq.s32.totalorder %s16, 1
    %p48 = por %p46, %p47
    %p49 = scmp.ne.s32.totalorder %s38, %s39
    %p50 = scmp.eq.s32.totalorder %s16, 0
    %p51 = por %p49, %p50
    %p52 = scmp.ne.s32.totalorder %s38, %s39
    %p53 = scmp.eq.s32.totalorder %s17, 1
    %p54 = por %p52, %p53
    %p56 = scmp.ne.s32.totalorder %s39, %s55
    %p57 = scmp.eq.s32.totalorder %s17, 0
    %p58 = por %p56, %p57
    %s60 = sadd.s32 %s59, 1
    %p63 = scmp.eq.s32.totalorder %s11, 1
    %p64 = scmp.ne.s32.totalorder %s59, %s61
    %p65 = scmp.eq.s32.totalorder %s11, 0
    %p66 = por %p64, %p65
    %p67 = scmp.ne.s32.totalorder %s59, %s61
    %p68 = scmp.eq.s32.totalorder %s16, 1
    %p69 = por %p67, %p68
    %p70 = scmp.ne.s32.totalorder %s61, %s62
    %p71 = scmp.eq.s32.totalorder %s16, 0
    %p72 = por %p70, %p71
    %p73 = scmp.ne.s32.totalorder %s61, %s62
    %p74 = scmp.eq.s32.totalorder %s17, 1
    %p75 = por %p73, %p74
    %p77 = scmp.ne.s32.totalorder %s62, %s76
    %p78 = scmp.eq.s32.totalorder %s17, 0
    %p79 = por %p77, %p78
    %s81 = sadd.s32 %s80, 1
    %p84 = scmp.eq.s32.totalorder %s11, 1
    %p85 = scmp.ne.s32.totalorder %s80, %s82
    %p86 = scmp.eq.s32.totalorder %s11, 0
    %p87 = por %p85, %p86
    %p88 = scmp.ne.s32.totalorder %s80, %s82
    %p89 = scmp.eq.s32.totalorder %s16, 1
    %p90 = por %p88, %p89
    %p91 = scmp.ne.s32.totalorder %s82, %s83
    %p92 = scmp.eq.s32.totalorder %s16, 0
    %p93 = por %p91, %p92
    %p94 = scmp.ne.s32.totalorder %s82, %s83
    %p95 = scmp.eq.s32.totalorder %s17, 1
    %p96 = por %p94, %p95
    %p98 = scmp.ne.s32.totalorder %s83, %s97
    %p99 = scmp.eq.s32.totalorder %s17, 0
    %p100 = por %p98, %p99
    %s101 = ssub.s32 %s18, %s30
    %s102 = ssub.s32 %s19, %s26
    %s103 = sor.u32 %s101, %s102
    %p104 = scmp.eq.s32.totalorder %s103, 0
    %s106 = sadd.s32 %s105, 1
    %s107 = scalar_select %p104, %s105, %s106
    %p110 = pneg %p104
    %p111 = scmp.eq.s32.totalorder %s11, 1
    %p112 = por %p110, %p111
    %p113 = scmp.ne.s32.totalorder %s105, %s108
    %p114 = scmp.eq.s32.totalorder %s11, 0
    %p115 = por %p113, %p114
    %p116 = scmp.ne.s32.totalorder %s105, %s108
    %p117 = scmp.eq.s32.totalorder %s16, 1
    %p118 = por %p116, %p117
    %p119 = scmp.ne.s32.totalorder %s108, %s109
    %p120 = scmp.eq.s32.totalorder %s16, 0
    %p121 = por %p119, %p120
    %p122 = scmp.ne.s32.totalorder %s108, %s109
    %p123 = scmp.eq.s32.totalorder %s17, 1
    %p124 = por %p122, %p123
    %p126 = scmp.ne.s32.totalorder %s109, %s125
    %p127 = scmp.eq.s32.totalorder %s17, 0
    %p128 = por %p126, %p127
    %s129 = ssub.s32 %s18, %s30
    %s130 = ssub.s32 %s19, %s26
    %s131 = sor.u32 %s129, %s130
    %p132 = scmp.eq.s32.totalorder %s131, 0
    %s134 = sadd.s32 %s133, 1
    %s135 = scalar_select %p132, %s133, %s134
    %p138 = pneg %p132
    %p139 = scmp.eq.s32.totalorder %s11, 1
    %p140 = por %p138, %p139
    %p141 = scmp.ne.s32.totalorder %s133, %s136
    %p142 = scmp.eq.s32.totalorder %s11, 0
    %p143 = por %p141, %p142
    %p144 = scmp.ne.s32.totalorder %s133, %s136
    %p145 = scmp.eq.s32.totalorder %s16, 1
    %p146 = por %p144, %p145
    %p147 = scmp.ne.s32.totalorder %s136, %s137
    %p148 = scmp.eq.s32.totalorder %s16, 0
    %p149 = por %p147, %p148
    %p150 = scmp.ne.s32.totalorder %s136, %s137
    %p151 = scmp.eq.s32.totalorder %s17, 1
    %p152 = por %p150, %p151
    %p154 = scmp.ne.s32.totalorder %s137, %s153
    %p155 = scmp.eq.s32.totalorder %s17, 0
    %p156 = por %p154, %p155
    %p157 = scmp.le.s32.totalorder 1, %s11
    %p158 = scmp.lt.s32.totalorder %s11, 3
    %p159 = pnand %p157, %p158
    %p160 = pneg %p159
    // Predicated region
    $region9: #{tpu_custom_call.1} parent=5 // pred_check
      _
    $region10: #{tpu_custom_call.1} parent=5 // pred_check_branch
      %162 = sbr.rel (%p159) target = $region12
    $region11: #{tpu_custom_call.1} parent=5 // pred_region
      %s163 = ssub.s32 %s11, 1
      // Predicated region
      $region13: #{tpu_custom_call.1} parent=11 // pred_check
        %p164 = pneg %p72
      $region14: #{tpu_custom_call.1} parent=11 // pred_check_branch
        %166 = sbr.rel (%p164) target = $region16
      $region15: #{tpu_custom_call.1} parent=11 // pred_region
        _
      $region16: #{tpu_custom_call.1} parent=11 // pred_fallthru
        _
      // Predicated region
      $region17: #{tpu_custom_call.1} parent=11 // pred_check
        %p167 = pneg %p93
      $region18: #{tpu_custom_call.1} parent=11 // pred_check_branch
        %169 = sbr.rel (%p167) target = $region20
      $region19: #{tpu_custom_call.1} parent=11 // pred_region
        _
      $region20: #{tpu_custom_call.1} parent=11 // pred_fallthru
        _
    $region12: #{tpu_custom_call.1} parent=5 // pred_fallthru
      _
    %p170 = scmp.lt.s32.totalorder %s11, 2
    // Predicated region
    $region21: #{tpu_custom_call.1} parent=5 // pred_check
      %p171 = pneg %p170
    $region22: #{tpu_custom_call.1} parent=5 // pred_check_branch
      %173 = sbr.rel (%p171) target = $region24
    $region23: #{tpu_custom_call.1} parent=5 // pred_region
      // Predicated region
      $region25: #{tpu_custom_call.1} parent=23 // pred_check
        %p174 = pneg %p45
      $region26: #{tpu_custom_call.1} parent=23 // pred_check_branch
        %176 = sbr.rel (%p174) target = $region28
      $region27: #{tpu_custom_call.1} parent=23 // pred_region
        %s177 = smul.u32 2, %s19
        %p178 = scmp.lt.s32.totalorder %s18, 1
        %s179 = scalar_select %p178, %s18, 1
        %p180 = scmp.lt.s32.totalorder %s177, 1
        %s181 = scalar_select %p180, %s177, 1
        %s182 = smul.addr %s179, 2
        %s183 = sadd.s32 %s181, %s182
        %s184 = smul.addr %s183, 4
        %s185 = scalar_lea.vmem %s0, %s184
        %s186 = smul.u32 2, %s19
      $region28: #{tpu_custom_call.1} parent=23 // pred_fallthru
        _
    $region24: #{tpu_custom_call.1} parent=5 // pred_fallthru
      _
    %p187 = scmp.le.s32.totalorder 1, %s11
    %p188 = scmp.lt.s32.totalorder %s11, 3
    %p189 = pnand %p187, %p188
    %p190 = pneg %p189
    // Predicated region
    $region29: #{tpu_custom_call.1} parent=5 // pred_check
      _
    $region30: #{tpu_custom_call.1} parent=5 // pred_check_branch
      %192 = sbr.rel (%p189) target = $region32
    $region31: #{tpu_custom_call.1} parent=5 // pred_region
      %s193 = ssub.s32 %s11, 1
      %s194 = smul.u32 2, %s21
      %p195 = scmp.lt.s32.totalorder %s20, 1
      %s196 = scalar_select %p195, %s20, 1
      %p197 = scmp.lt.s32.totalorder %s194, 1
      %s198 = scalar_select %p197, %s194, 1
      %s199 = smul.addr %s196, 2
      %s200 = sadd.s32 %s198, %s199
      %s201 = smul.addr %s200, 4
      %s202 = scalar_lea.vmem %s0, %s201
      %p203 = pneg %p51
      %p204 = pneg %p48
      %p205 = pneg %p72
      %p206 = pneg %p69
      %p207 = pneg %p93
      %p208 = pneg %p90
      %p209 = pneg %p121
      %p210 = pneg %p118
      %s211 = smul.u32 2, %s21
      %p212 = scmp.lt.s32.totalorder %s20, 1
      %s213 = scalar_select %p212, %s20, 1
      %p214 = scmp.lt.s32.totalorder %s211, 1
      %s215 = scalar_select %p214, %s211, 1
      %s216 = smul.addr %s213, 4
      %s217 = sadd.s32 %s215, %s216
      %s218 = smul.addr %s217, 8
      %s219 = scalar_lea.vmem %s3, %s218
      %p220 = pneg %p149
      %p221 = pneg %p146
      %s222 = smul.u32 2, %s21
      %p223 = scmp.lt.s32.totalorder %s20, 1
      %s224 = scalar_select %p223, %s20, 1
      %p225 = scmp.lt.s32.totalorder %s222, 1
      %s226 = scalar_select %p225, %s222, 1
      %s227 = smul.addr %s224, 4
      %s228 = sadd.s32 %s226, %s227
      %s229 = smul.addr %s228, 8
      %s230 = scalar_lea.vmem %s4, %s229
      %s231 = smul.u32 2, %s21
      %p232 = scmp.lt.s32.totalorder %s20, 1
      %s233 = scalar_select %p232, %s20, 1
      %p234 = scmp.lt.s32.totalorder %s231, 1
      %s235 = scalar_select %p234, %s231, 1
      %s236 = smul.addr %s233, 2
      %s237 = sadd.s32 %s235, %s236
      %s238 = smul.addr %s237, 4
      %s239 = scalar_lea.vmem %s0, %s238
      %s240 = smul.u32 2, %s21
      %s241 = smul.u32 2, %s21
      %p242 = scmp.lt.s32.totalorder %s20, 1
      %s243 = scalar_select %p242, %s20, 1
      %p244 = scmp.lt.s32.totalorder %s241, 1
      %s245 = scalar_select %p244, %s241, 1
      %s246 = smul.addr %s243, 4
      %s247 = sadd.s32 %s245, %s246
      %s248 = smul.addr %s247, 8
      %s249 = scalar_lea.vmem %s3, %s248
      %s250 = smul.u32 2, %s21
      %s251 = smul.u32 2, %s21
      %p252 = scmp.lt.s32.totalorder %s20, 1
      %s253 = scalar_select %p252, %s20, 1
      %p254 = scmp.lt.s32.totalorder %s251, 1
      %s255 = scalar_select %p254, %s251, 1
      %s256 = smul.addr %s253, 4
      %s257 = sadd.s32 %s255, %s256
      %s258 = smul.addr %s257, 8
      %s259 = scalar_lea.vmem %s4, %s258
      %s260 = smul.u32 2, %s21
      %v261 = vld [vmem:[%s239] sm:$0xff]
      %v262 = vld [vmem:[%s1] sm:$0xff]
      %v263 = vld [vmem:[%s1 + $0x8] sm:$0xff]
      %v264 = vld [vmem:[%s1 + $0x10] sm:$0xff]
      %v265 = vld [vmem:[%s1 + $0x18] sm:$0x7f]
      %v266 = vld [vmem:[%s2] sm:$0xff]
      %v267 = vld [vmem:[%s2 + $0x8] sm:$0xff]
      %v268 = vld [vmem:[%s2 + $0x10] sm:$0xff]
      %v269 = vld [vmem:[%s2 + $0x18] sm:$0x7f]
      %271 = vset.pattern.permute.xlu0 0
      %272 = vperm.xlu0 %271, %v266
      %v273 = vpop.permute.xlu0 %272
      %276 = vset.pattern.permute.xlu0 0
      %277 = vperm.xlu0 %276, %v267
      %v278 = vpop.permute.xlu0 %277
      %281 = vset.pattern.permute.xlu0 0
      %282 = vperm.xlu0 %281, %v268
      %v283 = vpop.permute.xlu0 %282
      %286 = vset.pattern.permute.xlu0 0
      %287 = vperm.xlu0 %286, %v269
      %v288 = vpop.permute.xlu0 %287
      %291 = vst [vmem:[#allocation1] ss:$2 sm:$0xff] %v261
      %v292 = vld.sshfl [vmem:[#allocation1] sm:$0xff pattern:$0x75316420]
      %v293 = vld.sshfl [vmem:[#allocation1 + $0x8] sm:$0xff pattern:$0x75316420]
      %vm294 = vcmask 31744
      %v296 = vsel %vm294, %v262, 0
      %v299 = vsel %vm294, %v263, 0
      %v302 = vsel %vm294, %v264, 0
      %v305 = vsel %vm294, %v265, 0
      %vm307 = vcmask 1043456
      %v308 = vsel %vm307, %v292, 0
      %v310 = vsel %vm307, %v293, 0
      %312 = vmatpush.msra.mxu0 0.0
      %313 = vmatpush.msra.mxu0 0.0
      %314 = vmatpush.msra.mxu0 0.0
      %315 = vmatpush.msra.mxu0 0.0
      %316 = vmatpush.msra.mxu0 0.0
      %317 = vmatpush.msra.mxu0 0.0
      %318 = vmatpush.msra.mxu0 0.0
      %319 = vmatpush.msra.mxu0 0.0
      %320 = vmatpush.msra.mxu0 0.0
      %321 = vmatpush.msra.mxu0 0.0
      %322 = vmatpush.msra.mxu0 0.0
      %323 = vmatpush.msra.mxu0 0.0
      %324 = vmatpush.msra.mxu0 0.0
      %325 = vmatpush.msra.mxu0 0.0
      %326 = vmatpush.msra.mxu0 0.0
      %327 = vmatpush.msra.mxu0 %v308
      %328 = vmatmul.f32.gmra.mxu0 %v296
      %v329 = vpop.f32.mrf.mxu0
      %v330 = vadd.f32 %v273, %v329
      %331 = vmatmul.f32.gmra.mxu0 %v299
      %v332 = vpop.f32.mrf.mxu0
      %v333 = vadd.f32 %v278, %v332
      %334 = vmatmul.f32.gmra.mxu0 %v302
      %v335 = vpop.f32.mrf.mxu0
      %v336 = vadd.f32 %v283, %v335
      %337 = vmatmul.f32.gmra.mxu0 %v305
      %v338 = vpop.f32.mrf.mxu0
      %v339 = vadd.f32 %v288, %v338
      %340 = vdwg.mxu0
      %341 = vmatpush.msra.mxu0 0.0
      %342 = vmatpush.msra.mxu0 0.0
      %343 = vmatpush.msra.mxu0 0.0
      %344 = vmatpush.msra.mxu0 0.0
      %345 = vmatpush.msra.mxu0 0.0
      %346 = vmatpush.msra.mxu0 0.0
      %347 = vmatpush.msra.mxu0 0.0
      %348 = vmatpush.msra.mxu0 0.0
      %349 = vmatpush.msra.mxu0 0.0
      %350 = vmatpush.msra.mxu0 0.0
      %351 = vmatpush.msra.mxu0 0.0
      %352 = vmatpush.msra.mxu0 0.0
      %353 = vmatpush.msra.mxu0 0.0
      %354 = vmatpush.msra.mxu0 0.0
      %355 = vmatpush.msra.mxu0 0.0
      %356 = vmatpush.msra.mxu0 %v310
      %357 = vmatmul.f32.gmra.mxu0 %v296
      %v358 = vpop.f32.mrf.mxu0
      %v359 = vadd.f32 %v273, %v358
      %360 = vmatmul.f32.gmra.mxu0 %v299
      %v361 = vpop.f32.mrf.mxu0
      %v362 = vadd.f32 %v278, %v361
      %363 = vmatmul.f32.gmra.mxu0 %v302
      %v364 = vpop.f32.mrf.mxu0
      %v365 = vadd.f32 %v283, %v364
      %366 = vmatmul.f32.gmra.mxu0 %v305
      %v367 = vpop.f32.mrf.mxu0
      %v368 = vadd.f32 %v288, %v367
      %369 = vdwg.mxu0
      %370 = vst [vmem:[%s249] sm:$0xff] %v330
      %371 = vst [vmem:[%s249 + $0x8] sm:$0xff] %v359
      %372 = vst [vmem:[%s249 + $0x10] sm:$0xf] %v333
      %373 = vst [vmem:[%s249 + $0x18] sm:$0xf] %v362
      %374 = vst [vmem:[%s259] sm:$0xff] %v336
      %375 = vst [vmem:[%s259 + $0x8] sm:$0xff] %v365
      %376 = vst [vmem:[%s259 + $0x10] sm:$0x7f] %v339
      %377 = vst [vmem:[%s259 + $0x18] sm:$0x7f] %v368
      %s378 = smul.u32 2, %s21
      %p379 = scmp.lt.s32.totalorder %s20, 1
      %s380 = scalar_select %p379, %s20, 1
      %p381 = scmp.lt.s32.totalorder %s378, 1
      %s382 = scalar_select %p381, %s378, 1
      %s383 = smul.addr %s380, 4
      %s384 = sadd.s32 %s382, %s383
      %s385 = smul.addr %s384, 8
      %s386 = scalar_lea.vmem %s3, %s385
      %s387 = smul.u32 2, %s21
      %p388 = scmp.lt.s32.totalorder %s20, 1
      %s389 = scalar_select %p388, %s20, 1
      %p390 = scmp.lt.s32.totalorder %s387, 1
      %s391 = scalar_select %p390, %s387, 1
      %s392 = smul.addr %s389, 4
      %s393 = sadd.s32 %s391, %s392
      %s394 = smul.addr %s393, 8
      %s395 = scalar_lea.vmem %s4, %s394
      // Predicated region
      $region33: #{tpu_custom_call.1} parent=31 // pred_check
        %p396 = pneg %p118
      $region34: #{tpu_custom_call.1} parent=31 // pred_check_branch
        %398 = sbr.rel (%p396) target = $region36
      $region35: #{tpu_custom_call.1} parent=31 // pred_region
        %s399 = smul.u32 2, %s21
      $region36: #{tpu_custom_call.1} parent=31 // pred_fallthru
        _
      // Predicated region
      $region37: #{tpu_custom_call.1} parent=31 // pred_check
        %p400 = pneg %p146
      $region38: #{tpu_custom_call.1} parent=31 // pred_check_branch
        %402 = sbr.rel (%p400) target = $region40
      $region39: #{tpu_custom_call.1} parent=31 // pred_region
        %s403 = smul.u32 2, %s21
      $region40: #{tpu_custom_call.1} parent=31 // pred_fallthru
        _
    $region32: #{tpu_custom_call.1} parent=5 // pred_fallthru
      _
    %p404 = scmp.le.s32.totalorder 2, %s11
    // Predicated region
    $region41: #{tpu_custom_call.1} parent=5 // pred_check
      %p405 = pneg %p404
    $region42: #{tpu_custom_call.1} parent=5 // pred_check_branch
      %407 = sbr.rel (%p405) target = $region44
    $region43: #{tpu_custom_call.1} parent=5 // pred_region
      %s408 = ssub.s32 %s11, 2
      // Predicated region
      $region45: #{tpu_custom_call.1} parent=43 // pred_check
        %p409 = pneg %p124
      $region46: #{tpu_custom_call.1} parent=43 // pred_check_branch
        %411 = sbr.rel (%p409) target = $region48
      $region47: #{tpu_custom_call.1} parent=43 // pred_region
        %s412 = smul.u32 2, %s23
        %p413 = scmp.lt.s32.totalorder %s22, 1
        %s414 = scalar_select %p413, %s22, 1
        %p415 = scmp.lt.s32.totalorder %s412, 1
        %s416 = scalar_select %p415, %s412, 1
        %s417 = smul.addr %s414, 4
        %s418 = sadd.s32 %s416, %s417
        %s419 = smul.addr %s418, 8
        %s420 = scalar_lea.vmem %s3, %s419
      $region48: #{tpu_custom_call.1} parent=43 // pred_fallthru
        _
      // Predicated region
      $region49: #{tpu_custom_call.1} parent=43 // pred_check
        %p421 = pneg %p152
      $region50: #{tpu_custom_call.1} parent=43 // pred_check_branch
        %423 = sbr.rel (%p421) target = $region52
      $region51: #{tpu_custom_call.1} parent=43 // pred_region
        %s424 = smul.u32 2, %s23
        %p425 = scmp.lt.s32.totalorder %s22, 1
        %s426 = scalar_select %p425, %s22, 1
        %p427 = scmp.lt.s32.totalorder %s424, 1
        %s428 = scalar_select %p427, %s424, 1
        %s429 = smul.addr %s426, 4
        %s430 = sadd.s32 %s428, %s429
        %s431 = smul.addr %s430, 8
        %s432 = scalar_lea.vmem %s4, %s431
      $region52: #{tpu_custom_call.1} parent=43 // pred_fallthru
        _
    $region44: #{tpu_custom_call.1} parent=5 // pred_fallthru
      _
  $region6: #{tpu_custom_call.1} parent=0 // loop_footer
    %s15 = sadd.s32 1, %s11
  $region7: #{tpu_custom_call.1} parent=0 // loop_footer_branch
    %10 = sbr.rel target = $region3
  $region8: #{tpu_custom_call.1} parent=0 // loop_exit
    _

</llo_original>
